<compile_context>
chip_gen: v6e
topology: v6e:2x2x1
jax: 0.10.0
libtpu: 0.0.40
codegen_flags: <defaults>
</compile_context>

<pallas_src>
import numpy as np
import jax
import jax.numpy as jnp
from jax.experimental import pallas as pl
from jax.experimental.pallas import tpu as pltpu

# Small synthetic config (the real module loads a frozen pretrained Llama).
B, T, H = 2, 8, 32                   # batch, seq, hidden
V = 256                              # vocab (demo)
NUM_LABELS = 4
# tokenizer.encode(label, bos=False, eos=False) replaced by fixed id lists.
LABEL_TOKEN_IDS = [[3, 17], [5, 101], [9, 21, 42], [7]]

ROW_PAD = 8          # sublane multiple for the row (batch) axis
LANE_PAD = 128       # lane multiple for the label axis (lane-dense output)
TN_MAX = 1024        # vocab tile cap (v7x VMEM-safe; review recommendation)


def _pick_vocab_tile(vocab, tn_max):
    """Largest multiple of 128 that divides `vocab`, capped at tn_max.

    Falls back to a non-dividing tile (the kernel then masks the padded lanes
    of the final tile) when no such divisor exists.
    """
    best = 0
    tn = 128
    while tn <= min(tn_max, vocab):
        if vocab % tn == 0:
            best = tn
        tn += 128
    if best:
        return best
    return max(128, min(tn_max, 128 * pl.cdiv(vocab, 128)))


def prepare_zero_shot_head(lm_head_w, label_matrix, *, tn_max=TN_MAX):
    """One-time preprocessing of the frozen lm head + label-token tables.

    lm_head_w:    (H, V) lm-head weight (any float dtype).
    label_matrix: (num_labels, V) multi-hot count matrix,
                  label_matrix[i, v] = #times token v appears in label i.
    Returns a dict of device arrays + static tiling info; reuse across calls.
    """
    hid, vocab = lm_head_w.shape
    num_labels = label_matrix.shape[0]
    tn = _pick_vocab_tile(vocab, tn_max)
    vocab_pad = pl.cdiv(vocab, tn) * tn
    l_pad = ((num_labels + LANE_PAD - 1) // LANE_PAD) * LANE_PAD

    # Pre-transposed, zero-padded lm head: every vocab tile is a fully
    # contiguous (TN, H) bf16 slab -> maximally efficient weight DMA.
    w_t = jnp.zeros((vocab_pad, hid), jnp.bfloat16)
    w_t = w_t.at[:vocab, :].set(lm_head_w.T.astype(jnp.bfloat16))

    # (V_pad, L_pad) transposed label-count matrix.  Stored bf16 (small integer
    # counts are exact in bf16) to halve its HBM stream; padded rows/lanes = 0.
    mT = jnp.zeros((vocab_pad, l_pad), jnp.float32)
    mT = mT.at[:vocab, :num_labels].set(label_matrix.astype(jnp.float32).T)
    counts = jnp.sum(mT, axis=0, keepdims=True)                 # (1, L_pad) f32

    return {
        "w_t": w_t, "mT": mT.astype(jnp.bfloat16), "counts": counts,
        "tn": tn, "vocab": vocab, "vocab_pad": vocab_pad,
        "hid": hid, "num_labels": num_labels, "l_pad": l_pad,
    }


def _make_zero_shot_kernel(tn, vocab, needs_mask):
    """Kernel for one vocab tile: lm-head matmul + online LSE + label dot."""

    def kernel(h_ref, w_ref, mT_ref, counts_ref, out_ref, m_ref, s_ref):
        j = pl.program_id(0)

        @pl.when(j == 0)
        def _init():
            out_ref[...] = jnp.zeros_like(out_ref)
            m_ref[...] = jnp.full(m_ref.shape, -jnp.inf, dtype=m_ref.dtype)
            s_ref[...] = jnp.zeros_like(s_ref)

        # lm head for this vocab tile: (rows, H) . (TN, H)^T contracted on H,
        # bf16 x bf16 -> f32 on the MXU.
        logits = jax.lax.dot_general(
            h_ref[...], w_ref[...],
            dimension_numbers=(((1,), (1,)), ((), ())),
            preferred_element_type=jnp.float32)                  # (rows, TN)

        if needs_mask:
            # Zero-padded weight columns -> mask their logits to -inf for the
            # logsumexp (their mT rows are already zero for the label dot).
            col = j * tn + jax.lax.broadcasted_iota(jnp.int32, logits.shape, 1)
            lse_logits = jnp.where(col < vocab, logits, -jnp.inf)
        else:
            lse_logits = logits

        # Online (flash-softmax style) logsumexp over vocab tiles (all f32).
        m_prev = m_ref[...]                                      # (rows, 1)
        m_new = jnp.maximum(m_prev,
                            jnp.max(lse_logits, axis=-1, keepdims=True))
        alpha = jnp.exp(m_prev - m_new)
        s_ref[...] = alpha * s_ref[...] + jnp.sum(
            jnp.exp(lse_logits - m_new), axis=-1, keepdims=True)
        m_ref[...] = m_new

        # Partial label reduction on raw logits.  mT is bf16 in HBM only to
        # halve its stream; the dot itself stays in f32 for accuracy.
        out_ref[...] += jnp.dot(logits, mT_ref[...].astype(jnp.float32),
                                preferred_element_type=jnp.float32)

        @pl.when(j == pl.num_programs(0) - 1)
        def _finalize():
            lse = m_ref[...] + jnp.log(s_ref[...])               # (rows, 1)
            out_ref[...] -= lse * counts_ref[...]                # broadcast

    return kernel


def llama_zero_shot_classifier(input_ids, embed_table, head):
    """Forward pass of LlamaZeroShotClassifier (synthetic frozen backbone).

    input_ids:   (B, T) int32
    embed_table: (V, H) bf16 -- stand-in for the frozen Llama backbone
    head:        dict from prepare_zero_shot_head() (one-time preprocessing)
    """
    bsz = input_ids.shape[0]
    hid, vocab, tn = head["hid"], head["vocab"], head["tn"]
    vocab_pad, l_pad = head["vocab_pad"], head["l_pad"]
    num_labels = head["num_labels"]
    rows = ((bsz + ROW_PAD - 1) // ROW_PAD) * ROW_PAD
    needs_mask = vocab_pad != vocab

    # TODO(synk): the frozen pretrained Llama transformer stack is not
    # reproduced; a deterministic embedding lookup stands in for it so the
    # classifier head (lm-head + log_softmax + label log-prob sum at
    # position 0) is exercised exactly.
    hidden0 = embed_table[input_ids[:, 0]]                       # (B, H) bf16
    hidden0 = jnp.pad(hidden0, ((0, rows - bsz), (0, 0)))        # (rows, H)

    grid = (vocab_pad // tn,)
    flops = 2 * rows * hid * vocab_pad + 2 * rows * vocab_pad * l_pad
    bytes_accessed = (rows * hid * 2 + vocab_pad * hid * 2
                      + vocab_pad * l_pad * 2 + l_pad * 4 + rows * l_pad * 4)

    # VMEM budget: double-buffered weight + label tiles plus residents, with
    # headroom; capped at 40 MiB so the same kernel stays safe on v7x (64 MiB
    # physical VMEM) while still allowing TN=1024 at H=4096 (~17 MiB tiles).
    vmem_need = (2 * tn * hid * 2 + 2 * tn * l_pad * 2
                 + 2 * rows * hid * 2 + 2 * l_pad * 4
                 + rows * l_pad * 4 + 4 * rows * 4)
    vmem_limit = int(min(max(32 * 1024 * 1024, 3 * vmem_need // 2),
                         40 * 1024 * 1024))

    # TODO(synk): on v7x the vocab stream could additionally be split across
    # the 2 TensorCores (leading "parallel" axis + partial-LSE merge epilogue).
    out = pl.pallas_call(
        _make_zero_shot_kernel(tn, vocab, needs_mask),
        out_shape=jax.ShapeDtypeStruct((rows, l_pad), jnp.float32),
        grid_spec=pltpu.PrefetchScalarGridSpec(
            num_scalar_prefetch=0,
            grid=grid,
            in_specs=[
                pl.BlockSpec((rows, hid), lambda j: (0, 0)),  # hidden (resident)
                pl.BlockSpec((tn, hid), lambda j: (j, 0)),    # contiguous weight slab
                pl.BlockSpec((tn, l_pad), lambda j: (j, 0)),  # label-count tile (bf16)
                pl.BlockSpec((1, l_pad), lambda j: (0, 0)),   # per-label counts
            ],
            out_specs=pl.BlockSpec((rows, l_pad), lambda j: (0, 0)),
            scratch_shapes=[
                pltpu.VMEM((rows, 1), jnp.float32),   # running max
                pltpu.VMEM((rows, 1), jnp.float32),   # running sum-exp
            ],
        ),
        compiler_params=pltpu.CompilerParams(
            dimension_semantics=("arbitrary",),
            vmem_limit_bytes=vmem_limit,
        ),
        cost_estimate=pl.CostEstimate(
            flops=flops,
            transcendentals=rows * vocab_pad,
            bytes_accessed=bytes_accessed),
    )(hidden0.astype(jnp.bfloat16), head["w_t"], head["mT"], head["counts"])

    return out[:bsz, :num_labels]


def _reference(input_ids, embed_table, lm_head_w, label_token_ids):
    """Pure-JAX reference mirroring the PyTorch forward (same bf16 weights)."""
    h = embed_table[input_ids].astype(jnp.float32)               # (B, T, H)
    logits = jnp.einsum("bth,hv->btv", h, lm_head_w.astype(jnp.float32))
    logp = jax.nn.log_softmax(logits, axis=-1)                   # (B, T, V)
    cols = []
    for ids in label_token_ids:
        total = jnp.sum(logp[:, :, jnp.asarray(ids)], axis=-1)   # (B, T)
        cols.append(total[:, 0])
    return jnp.stack(cols, axis=1)                               # (B, L)


def _run_case(vocab, tn_max, seed):
    key = jax.random.PRNGKey(seed)
    k_emb, k_head, k_ids = jax.random.split(key, 3)

    embed_table = (jax.random.normal(k_emb, (vocab, H), jnp.float32) * 0.5
                   ).astype(jnp.bfloat16)
    lm_head_w = (jax.random.normal(k_head, (H, vocab), jnp.float32) * 0.5
                 ).astype(jnp.bfloat16)
    input_ids = jax.random.randint(k_ids, (B, T), 0, vocab, dtype=jnp.int32)

    # Multi-hot count matrix: M[i, v] = #times token v appears in label i.
    label_matrix = np.zeros((NUM_LABELS, vocab), dtype=np.float32)
    for i, ids in enumerate(LABEL_TOKEN_IDS):
        for tok in ids:
            label_matrix[i, tok] += 1.0
    label_matrix = jnp.asarray(label_matrix)

    head = prepare_zero_shot_head(lm_head_w, label_matrix, tn_max=tn_max)
    out = llama_zero_shot_classifier(input_ids, embed_table, head)
    out = jax.block_until_ready(out)

    ref = _reference(input_ids, embed_table, lm_head_w, LABEL_TOKEN_IDS)
    assert out.shape == (B, NUM_LABELS) and out.dtype == jnp.float32
    np.testing.assert_allclose(np.asarray(out), np.asarray(ref),
                               rtol=2e-4, atol=2e-4)


if __name__ == "__main__":
    # Case 1: vocab divides the tile exactly (no masking path), default TN cap.
    _run_case(vocab=V, tn_max=TN_MAX, seed=0)
    # Case 2: ragged vocab -> zero-padded final tile with in-kernel -inf mask.
    _run_case(vocab=200, tn_max=128, seed=1)
    print("KERNEL_OK")
</pallas_src>

<mosaic_0001>
module attributes {stable_mosaic.version = 11 : i64} {
  func.func @kernel(%arg0: i32, %arg1: memref<8x32xbf16, #tpu.memory_space<vmem>>, %arg2: memref<256x32xbf16, #tpu.memory_space<vmem>>, %arg3: memref<256x128xbf16, #tpu.memory_space<vmem>>, %arg4: memref<1x128xf32, #tpu.memory_space<vmem>>, %arg5: memref<8x128xf32, #tpu.memory_space<vmem>>, %arg6: memref<8x1xf32, #tpu.memory_space<vmem>>, %arg7: memref<8x1xf32, #tpu.memory_space<vmem>>) attributes {dimension_semantics = [#tpu.dimension_semantics<arbitrary>], iteration_bounds = array<i64: 1>, scalar_prefetch = 0 : i64, scratch_operands = 2 : i64, tpu.core_type = #tpu.core_type<tc>, window_params = [{pipeline_mode = #tpu.pipeline_mode<synchronous>, transform_indices = @transform_0, window_bounds = array<i64: 8, 32>}, {transform_indices = @transform_1, window_bounds = array<i64: 256, 32>}, {transform_indices = @transform_2, window_bounds = array<i64: 256, 128>}, {pipeline_mode = #tpu.pipeline_mode<synchronous>, transform_indices = @transform_3, window_bounds = array<i64: 1, 128>}, {pipeline_mode = #tpu.pipeline_mode<synchronous>, transform_indices = @transform_4, window_bounds = array<i64: 8, 128>}]} {
    %c0_i32 = arith.constant 0 : i32
    %0 = arith.cmpi eq, %arg0, %c0_i32 : i32
    %1 = arith.extui %0 : i1 to i32
    %c0_i32_0 = arith.constant 0 : i32
    %2 = arith.cmpi ne, %1, %c0_i32_0 : i32
    scf.if %2 {
      %cst_23 = arith.constant 0.000000e+00 : f32
      %31 = vector.broadcast %cst_23 : f32 to vector<8x128xf32>
      %c0_24 = arith.constant 0 : index
      %c0_25 = arith.constant 0 : index
      %32 = vector.load %arg5[%c0_24, %c0_25] : memref<8x128xf32, #tpu.memory_space<vmem>>, vector<8x128xf32>
      tpu.vector_store %arg5[%c0_24, %c0_25], %31 {strides = array<i32>} : memref<8x128xf32, #tpu.memory_space<vmem>>, vector<8x128xf32>,
      %cst_26 = arith.constant 0xFF800000 : f32
      %33 = vector.broadcast %cst_26 : f32 to vector<8x1xf32>
      %c0_27 = arith.constant 0 : index
      %c0_28 = arith.constant 0 : index
      %34 = vector.load %arg6[%c0_27, %c0_28] : memref<8x1xf32, #tpu.memory_space<vmem>>, vector<8x1xf32>
      tpu.vector_store %arg6[%c0_27, %c0_28], %33 {strides = array<i32>} : memref<8x1xf32, #tpu.memory_space<vmem>>, vector<8x1xf32>,
      %cst_29 = arith.constant 0.000000e+00 : f32
      %35 = vector.broadcast %cst_29 : f32 to vector<8x1xf32>
      %c0_30 = arith.constant 0 : index
      %c0_31 = arith.constant 0 : index
      %36 = vector.load %arg7[%c0_30, %c0_31] : memref<8x1xf32, #tpu.memory_space<vmem>>, vector<8x1xf32>
      tpu.vector_store %arg7[%c0_30, %c0_31], %35 {strides = array<i32>} : memref<8x1xf32, #tpu.memory_space<vmem>>, vector<8x1xf32>,
    } else {
    }
    %c0 = arith.constant 0 : index
    %c0_1 = arith.constant 0 : index
    %3 = vector.load %arg1[%c0, %c0_1] : memref<8x32xbf16, #tpu.memory_space<vmem>>, vector<8x32xbf16>
    %c0_2 = arith.constant 0 : index
    %c0_3 = arith.constant 0 : index
    %4 = vector.load %arg2[%c0_2, %c0_3] : memref<256x32xbf16, #tpu.memory_space<vmem>>, vector<256x32xbf16>
    %cst = arith.constant dense<0.000000e+00> : vector<8x256xf32>
    %5 = tpu.matmul %3, %4, %cst {dimension_numbers = #tpu.dot_dimension_numbers<[1], [1], [0], [0], [0, 0, 1, 0], [], []>} : vector<8x32xbf16>, vector<256x32xbf16>, vector<8x256xf32> -> vector<8x256xf32>
    %c0_4 = arith.constant 0 : index
    %c0_5 = arith.constant 0 : index
    %6 = vector.load %arg6[%c0_4, %c0_5] : memref<8x1xf32, #tpu.memory_space<vmem>>, vector<8x1xf32>
    %cst_6 = arith.constant dense<0xFF800000> : vector<8xf32>
    %7 = vector.multi_reduction <maximumf>, %5, %cst_6 [1] : vector<8x256xf32> to vector<8xf32>
    %8 = vector.shape_cast %7 : vector<8xf32> to vector<8x1xf32>
    %9 = arith.maximumf %6, %8 : vector<8x1xf32>
    %10 = arith.subf %6, %9 : vector<8x1xf32>
    %11 = math.exp %10 : vector<8x1xf32>
    %c0_7 = arith.constant 0 : index
    %c0_8 = arith.constant 0 : index
    %12 = vector.load %arg7[%c0_7, %c0_8] : memref<8x1xf32, #tpu.memory_space<vmem>>, vector<8x1xf32>
    %13 = arith.mulf %11, %12 : vector<8x1xf32>
    %14 = vector.broadcast %9 : vector<8x1xf32> to vector<8x256xf32>
    %15 = arith.subf %5, %14 : vector<8x256xf32>
    %16 = math.exp %15 : vector<8x256xf32>
    %cst_9 = arith.constant dense<0.000000e+00> : vector<8xf32>
    %17 = vector.multi_reduction <add>, %16, %cst_9 [1] : vector<8x256xf32> to vector<8xf32>
    %18 = vector.shape_cast %17 : vector<8xf32> to vector<8x1xf32>
    %19 = arith.addf %13, %18 : vector<8x1xf32>
    %c0_10 = arith.constant 0 : index
    %c0_11 = arith.constant 0 : index
    %20 = vector.load %arg7[%c0_10, %c0_11] : memref<8x1xf32, #tpu.memory_space<vmem>>, vector<8x1xf32>
    tpu.vector_store %arg7[%c0_10, %c0_11], %19 {strides = array<i32>} : memref<8x1xf32, #tpu.memory_space<vmem>>, vector<8x1xf32>,
    %c0_12 = arith.constant 0 : index
    %c0_13 = arith.constant 0 : index
    %21 = vector.load %arg6[%c0_12, %c0_13] : memref<8x1xf32, #tpu.memory_space<vmem>>, vector<8x1xf32>
    tpu.vector_store %arg6[%c0_12, %c0_13], %9 {strides = array<i32>} : memref<8x1xf32, #tpu.memory_space<vmem>>, vector<8x1xf32>,
    %c0_14 = arith.constant 0 : index
    %c0_15 = arith.constant 0 : index
    %22 = vector.load %arg5[%c0_14, %c0_15] : memref<8x128xf32, #tpu.memory_space<vmem>>, vector<8x128xf32>
    %c0_16 = arith.constant 0 : index
    %c0_17 = arith.constant 0 : index
    %23 = vector.load %arg3[%c0_16, %c0_17] : memref<256x128xbf16, #tpu.memory_space<vmem>>, vector<256x128xbf16>
    %24 = arith.extf %23 : vector<256x128xbf16> to vector<256x128xf32>
    %cst_18 = arith.constant dense<0.000000e+00> : vector<8x128xf32>
    %25 = tpu.matmul %5, %24, %cst_18 {dimension_numbers = #tpu.dot_dimension_numbers<[1], [0], [0], [1], [0, 0, 1, 1], [], []>} : vector<8x256xf32>, vector<256x128xf32>, vector<8x128xf32> -> vector<8x128xf32>
    %26 = arith.addf %22, %25 : vector<8x128xf32>
    %c0_19 = arith.constant 0 : index
    %c0_20 = arith.constant 0 : index
    %27 = vector.load %arg5[%c0_19, %c0_20] : memref<8x128xf32, #tpu.memory_space<vmem>>, vector<8x128xf32>
    tpu.vector_store %arg5[%c0_19, %c0_20], %26 {strides = array<i32>} : memref<8x128xf32, #tpu.memory_space<vmem>>, vector<8x128xf32>,
    %c0_i32_21 = arith.constant 0 : i32
    %28 = arith.cmpi eq, %arg0, %c0_i32_21 : i32
    %29 = arith.extui %28 : i1 to i32
    %c0_i32_22 = arith.constant 0 : i32
    %30 = arith.cmpi ne, %29, %c0_i32_22 : i32
    scf.if %30 {
      %c0_23 = arith.constant 0 : index
      %c0_24 = arith.constant 0 : index
      %31 = vector.load %arg6[%c0_23, %c0_24] : memref<8x1xf32, #tpu.memory_space<vmem>>, vector<8x1xf32>
      %c0_25 = arith.constant 0 : index
      %c0_26 = arith.constant 0 : index
      %32 = vector.load %arg7[%c0_25, %c0_26] : memref<8x1xf32, #tpu.memory_space<vmem>>, vector<8x1xf32>
      %33 = math.log %32 : vector<8x1xf32>
      %34 = arith.addf %31, %33 : vector<8x1xf32>
      %c0_27 = arith.constant 0 : index
      %c0_28 = arith.constant 0 : index
      %35 = vector.load %arg5[%c0_27, %c0_28] : memref<8x128xf32, #tpu.memory_space<vmem>>, vector<8x128xf32>
      %c0_29 = arith.constant 0 : index
      %c0_30 = arith.constant 0 : index
      %36 = vector.load %arg4[%c0_29, %c0_30] : memref<1x128xf32, #tpu.memory_space<vmem>>, vector<1x128xf32>
      %37 = vector.broadcast %34 : vector<8x1xf32> to vector<8x128xf32>
      %38 = vector.broadcast %36 : vector<1x128xf32> to vector<8x128xf32>
      %39 = arith.mulf %37, %38 : vector<8x128xf32>
      %40 = arith.subf %35, %39 : vector<8x128xf32>
      %c0_31 = arith.constant 0 : index
      %c0_32 = arith.constant 0 : index
      %41 = vector.load %arg5[%c0_31, %c0_32] : memref<8x128xf32, #tpu.memory_space<vmem>>, vector<8x128xf32>
      tpu.vector_store %arg5[%c0_31, %c0_32], %40 {strides = array<i32>} : memref<8x128xf32, #tpu.memory_space<vmem>>, vector<8x128xf32>,
    } else {
    }
    return
  }
  func.func @transform_0(%arg0: i32) -> (i32, i32) {
    %c0_i32 = arith.constant 0 : i32
    %c0_i32_0 = arith.constant 0 : i32
    %c0_i32_1 = arith.constant 0 : i32
    return %c0_i32, %c0_i32_0 : i32, i32
  }
  func.func @transform_1(%arg0: i32) -> (i32, i32) {
    %c0_i32 = arith.constant 0 : i32
    %c0_i32_0 = arith.constant 0 : i32
    return %arg0, %c0_i32 : i32, i32
  }
  func.func @transform_2(%arg0: i32) -> (i32, i32) {
    %c0_i32 = arith.constant 0 : i32
    %c0_i32_0 = arith.constant 0 : i32
    return %arg0, %c0_i32 : i32, i32
  }
  func.func @transform_3(%arg0: i32) -> (i32, i32) {
    %c0_i32 = arith.constant 0 : i32
    %c0_i32_0 = arith.constant 0 : i32
    %c0_i32_1 = arith.constant 0 : i32
    return %c0_i32, %c0_i32_0 : i32, i32
  }
  func.func @transform_4(%arg0: i32) -> (i32, i32) {
    %c0_i32 = arith.constant 0 : i32
    %c0_i32_0 = arith.constant 0 : i32
    %c0_i32_1 = arith.constant 0 : i32
    return %c0_i32, %c0_i32_0 : i32, i32
  }
}

</mosaic_0001>

<llo_original>
// kernel: tpu_custom_call.1
$region0: #{tpu_custom_call.1}
  #allocation0 [shape = 'u32[]', space=smem, size = 0x4, offset = 0x4, fixed_abs, tag = 'smem constant byte address 0x4 - core index']
  #allocation1 [shape = 'u32[144,128]{1,0:T(1,128)}', space=vmem, size = 0x12000, scoped, tag = 'internal scratch']
  #allocation2 [shape = 'f32[8,1]{1,0:T(8,128)}', space=vmem, size = 0x1000, scoped, tag = 'scratch operand']
  #allocation3 [shape = 'f32[8,1]{1,0:T(8,128)}', space=vmem, size = 0x1000, scoped, tag = 'scratch operand']
  %s0 = inlined_call_operand.vmem [shape: bf16[8,32], index: 0, kind: input, shape index: {}]
  %s1 = inlined_call_operand.vmem [shape: bf16[256,32], index: 1, kind: input, shape index: {}]
  %s2 = inlined_call_operand.vmem [shape: bf16[256,128], index: 2, kind: input, shape index: {}]
  %s3 = inlined_call_operand.vmem [shape: f32[1,128], index: 3, kind: input, shape index: {}]
  %s4 = inlined_call_operand.hbm [shape: f32[8,128], index: 4, kind: output, shape index: {}]
  %s5 = sld [smem:[#allocation0]]
  $region34: #{tpu_custom_call.1} parent=0
    _
  %s7 = ssub.s32 1, %s5
  %s8 = scalar_select 0, %s7, %s5
  $region1: #{tpu_custom_call.1} parent=0
    #allocation4 [shape = 'u8[4096]{0}', space=vmem, size = 0x1000, scoped, tag = 'output window, operand 0, single buffered']
    #allocation5 [shape = 's32[1]{0}', space=sflag, size = 0x4, scoped, tag = 'scoped memory for tpu_custom_call.1']
    %9 = vsyncpa [#allocation5], 0
    // Predicated region
    $region2: #{tpu_custom_call.1} parent=1 // pred_check
      _
    $region3: #{tpu_custom_call.1} parent=1 // pred_check_branch
      %11 = sbr.rel (0) target = $region5
    $region4: #{tpu_custom_call.1} parent=1 // pred_region
      _
    $region5: #{tpu_custom_call.1} parent=1 // pred_fallthru
      _
    // Predicated region
    $region6: #{tpu_custom_call.1} parent=1 // pred_check
      _
    $region7: #{tpu_custom_call.1} parent=1 // pred_check_branch
      %13 = sbr.rel (0) target = $region9
    $region8: #{tpu_custom_call.1} parent=1 // pred_region
      _
    $region9: #{tpu_custom_call.1} parent=1 // pred_fallthru
      _
    // Predicated region
    $region10: #{tpu_custom_call.1} parent=1 // pred_check
      _
    $region11: #{tpu_custom_call.1} parent=1 // pred_check_branch
      %15 = sbr.rel (0) target = $region13
    $region12: #{tpu_custom_call.1} parent=1 // pred_region
      _
    $region13: #{tpu_custom_call.1} parent=1 // pred_fallthru
      _
    // Predicated region
    $region14: #{tpu_custom_call.1} parent=1 // pred_check
      _
    $region15: #{tpu_custom_call.1} parent=1 // pred_check_branch
      %17 = sbr.rel (0) target = $region17
    $region16: #{tpu_custom_call.1} parent=1 // pred_region
      _
    $region17: #{tpu_custom_call.1} parent=1 // pred_fallthru
      _
    %p19 = scmp.eq.s32.totalorder 0, 0
    // Predicated region
    $region18: #{tpu_custom_call.1} parent=1 // pred_check
      %p20 = pneg %p19
    $region19: #{tpu_custom_call.1} parent=1 // pred_check_branch
      %22 = sbr.rel (%p20) target = $region21
    $region20: #{tpu_custom_call.1} parent=1 // pred_region
      %23 = vst [vmem:[#allocation4] sm:$0xff] 0.0
      %vm24 = vcmask 7168
      %25 = vst.msk [vmem:[#allocation2] sm:$0xff] %vm24, -inf
      %26 = vst.msk [vmem:[#allocation3] sm:$0xff] %vm24, 0.0
    $region21: #{tpu_custom_call.1} parent=1 // pred_fallthru
      _
    %v27 = vld [vmem:[%s0] sm:$0xf]
    %v28 = vld [vmem:[%s1] sm:$0xf]
    %v29 = vld [vmem:[%s1 + $0x4] sm:$0xf]
    %v30 = vld [vmem:[%s1 + $0x8] sm:$0xf]
    %v31 = vld [vmem:[%s1 + $0xc] sm:$0xf]
    %v32 = vld [vmem:[%s1 + $0x10] sm:$0xf]
    %v33 = vld [vmem:[%s1 + $0x14] sm:$0xf]
    %v34 = vld [vmem:[%s1 + $0x18] sm:$0xf]
    %v35 = vld [vmem:[%s1 + $0x1c] sm:$0xf]
    %v36 = vld [vmem:[%s1 + $0x20] sm:$0xf]
    %v37 = vld [vmem:[%s1 + $0x24] sm:$0xf]
    %v38 = vld [vmem:[%s1 + $0x28] sm:$0xf]
    %v39 = vld [vmem:[%s1 + $0x2c] sm:$0xf]
    %v40 = vld [vmem:[%s1 + $0x30] sm:$0xf]
    %v41 = vld [vmem:[%s1 + $0x34] sm:$0xf]
    %v42 = vld [vmem:[%s1 + $0x38] sm:$0xf]
    %v43 = vld [vmem:[%s1 + $0x3c] sm:$0xf]
    %v44 = vld [vmem:[%s1 + $0x40] sm:$0xf]
    %v45 = vld [vmem:[%s1 + $0x44] sm:$0xf]
    %v46 = vld [vmem:[%s1 + $0x48] sm:$0xf]
    %v47 = vld [vmem:[%s1 + $0x4c] sm:$0xf]
    %v48 = vld [vmem:[%s1 + $0x50] sm:$0xf]
    %v49 = vld [vmem:[%s1 + $0x54] sm:$0xf]
    %v50 = vld [vmem:[%s1 + $0x58] sm:$0xf]
    %v51 = vld [vmem:[%s1 + $0x5c] sm:$0xf]
    %v52 = vld [vmem:[%s1 + $0x60] sm:$0xf]
    %v53 = vld [vmem:[%s1 + $0x64] sm:$0xf]
    %v54 = vld [vmem:[%s1 + $0x68] sm:$0xf]
    %v55 = vld [vmem:[%s1 + $0x6c] sm:$0xf]
    %v56 = vld [vmem:[%s1 + $0x70] sm:$0xf]
    %v57 = vld [vmem:[%s1 + $0x74] sm:$0xf]
    %v58 = vld [vmem:[%s1 + $0x78] sm:$0xf]
    %v59 = vld [vmem:[%s1 + $0x7c] sm:$0xf]
    %v92 = vunpack.c.l.b16 %v28
    %v93 = vunpack.c.l.b16 %v29
    %v94 = vunpack.c.l.b16 %v30
    %v95 = vunpack.c.l.b16 %v31
    %v96 = vunpack.c.l.b16 %v32
    %v97 = vunpack.c.l.b16 %v33
    %v98 = vunpack.c.l.b16 %v34
    %v99 = vunpack.c.l.b16 %v35
    %v100 = vunpack.c.l.b16 %v36
    %v101 = vunpack.c.l.b16 %v37
    %v102 = vunpack.c.l.b16 %v38
    %v103 = vunpack.c.l.b16 %v39
    %v104 = vunpack.c.l.b16 %v40
    %v105 = vunpack.c.l.b16 %v41
    %v106 = vunpack.c.l.b16 %v42
    %v107 = vunpack.c.l.b16 %v43
    %v108 = vunpack.c.l.b16 %v44
    %v109 = vunpack.c.l.b16 %v45
    %v110 = vunpack.c.l.b16 %v46
    %v111 = vunpack.c.l.b16 %v47
    %v112 = vunpack.c.l.b16 %v48
    %v113 = vunpack.c.l.b16 %v49
    %v114 = vunpack.c.l.b16 %v50
    %v115 = vunpack.c.l.b16 %v51
    %v116 = vunpack.c.l.b16 %v52
    %v117 = vunpack.c.l.b16 %v53
    %v118 = vunpack.c.l.b16 %v54
    %v119 = vunpack.c.l.b16 %v55
    %v120 = vunpack.c.l.b16 %v56
    %v121 = vunpack.c.l.b16 %v57
    %v122 = vunpack.c.l.b16 %v58
    %v123 = vunpack.c.l.b16 %v59
    %v124 = vpack.c.b16 %v93, %v92
    %v125 = vpack.c.b16 %v95, %v94
    %v126 = vpack.c.b16 %v97, %v96
    %v127 = vpack.c.b16 %v99, %v98
    %v128 = vpack.c.b16 %v101, %v100
    %v129 = vpack.c.b16 %v103, %v102
    %v130 = vpack.c.b16 %v105, %v104
    %v131 = vpack.c.b16 %v107, %v106
    %v132 = vpack.c.b16 %v109, %v108
    %v133 = vpack.c.b16 %v111, %v110
    %v134 = vpack.c.b16 %v113, %v112
    %v135 = vpack.c.b16 %v115, %v114
    %v136 = vpack.c.b16 %v117, %v116
    %v137 = vpack.c.b16 %v119, %v118
    %v138 = vpack.c.b16 %v121, %v120
    %v139 = vpack.c.b16 %v123, %v122
    %vm140 = vcmask 261120
    %v142 = vsel %vm140, %v27, 0
    %v145 = vsel %vm140, %v124, 0
    %v148 = vsel %vm140, %v125, 0
    %v151 = vsel %vm140, %v126, 0
    %v154 = vsel %vm140, %v127, 0
    %v157 = vsel %vm140, %v128, 0
    %v160 = vsel %vm140, %v129, 0
    %v163 = vsel %vm140, %v130, 0
    %v166 = vsel %vm140, %v131, 0
    %v169 = vsel %vm140, %v132, 0
    %v172 = vsel %vm140, %v133, 0
    %v175 = vsel %vm140, %v134, 0
    %v178 = vsel %vm140, %v135, 0
    %v181 = vsel %vm140, %v136, 0
    %v184 = vsel %vm140, %v137, 0
    %v187 = vsel %vm140, %v138, 0
    %v190 = vsel %vm140, %v139, 0
    %192 = vmatprep.subr.bf16.mxu0 0
    %193 = vmatpush1.bf16.xpose.msra.mxu0 %v166
    %194 = vmatprep.subr.bf16.mxu0 0
    %195 = vmatpush1.bf16.xpose.msra.mxu0 %v163
    %196 = vmatprep.subr.bf16.mxu0 0
    %197 = vmatpush1.bf16.xpose.msra.mxu0 %v160
    %198 = vmatprep.subr.bf16.mxu0 0
    %199 = vmatpush1.bf16.xpose.msra.mxu0 %v157
    %200 = vmatprep.subr.bf16.mxu0 0
    %201 = vmatpush1.bf16.xpose.msra.mxu0 %v154
    %202 = vmatprep.subr.bf16.mxu0 0
    %203 = vmatpush1.bf16.xpose.msra.mxu0 %v151
    %204 = vmatprep.subr.bf16.mxu0 0
    %205 = vmatpush1.bf16.xpose.msra.mxu0 %v148
    %206 = vmatprep.subr.bf16.mxu0 0
    %207 = vmatpush1.bf16.xpose.msra.mxu0 %v145
    %208 = vmatprep.subr.bf16.mxu0 0
    %209 = vmatpush2.bf16.xpose.msra.mxu0 %v190
    %210 = vmatprep.subr.bf16.mxu0 0
    %211 = vmatpush2.bf16.xpose.msra.mxu0 %v187
    %212 = vmatprep.subr.bf16.mxu0 0
    %213 = vmatpush2.bf16.xpose.msra.mxu0 %v184
    %214 = vmatprep.subr.bf16.mxu0 0
    %215 = vmatpush2.bf16.xpose.msra.mxu0 %v181
    %216 = vmatprep.subr.bf16.mxu0 0
    %217 = vmatpush2.bf16.xpose.msra.mxu0 %v178
    %218 = vmatprep.subr.bf16.mxu0 0
    %219 = vmatpush2.bf16.xpose.msra.mxu0 %v175
    %220 = vmatprep.subr.bf16.mxu0 0
    %221 = vmatpush2.bf16.xpose.msra.mxu0 %v172
    %222 = vmatprep.subr.bf16.mxu0 0
    %223 = vmatpush2.bf16.xpose.msra.mxu0 %v169
    %224 = vmatprep.mubr.bf16.mxu0 0
    %225 = vmatmul.mubr.bf16.gmra.mxu0 %v142
    %v226 = vpop.f32.mrf.mxu0
    %v227 = vadd.f32 0.0, %v226
    %v228 = vpop.f32.mrf.mxu0
    %v229 = vadd.f32 0.0, %v228
    %v230 = vpop.f32.mrf.mxu0
    %v231 = vpop.f32.mrf.mxu0
    %232 = vdwg.mxu0
    %v233 = vld [vmem:[#allocation2] sm:$0xff]
    %v234 = vmax.f32 %v227, %v229
    %235 = vmax.xlane.f32.xlu0 %v234
    %v236 = vpop.xlane.xlu0 %235
    %v237 = vmax.f32 %v233, %v236
    %v238 = vsub.f32 %v233, %v237
    %v239 = vmul.f32 %v238, 1.442695
    %v240 = vpow.pop %v239
    %v241 = vld [vmem:[#allocation3] sm:$0xff]
    %v242 = vmul.f32 %v240, %v241
    %244 = vset.pattern.permute.xlu0 0
    %245 = vperm.xlu0 %244, %v237
    %v246 = vpop.permute.xlu0 %245
    %v248 = vsub.f32 %v227, %v246
    %v249 = vsub.f32 %v229, %v246
    %v250 = vmul.f32 %v248, 1.442695
    %v251 = vpow.pop %v250
    %v252 = vmul.f32 %v249, 1.442695
    %v253 = vpow.pop %v252
    %v254 = vadd.f32 %v251, %v253
    %255 = vadd.xlane.f32.xlu0 %v254
    %v256 = vpop.xlane.xlu0 %255
    %v257 = vadd.f32 %v242, %v256
    %vm258 = vcmask 7168
    %259 = vst.msk [vmem:[#allocation3] sm:$0xff] %vm258, %v257
    %260 = vst.msk [vmem:[#allocation2] sm:$0xff] %vm258, %v237
    %v261 = vld [vmem:[#allocation4] sm:$0xff]
    %v262 = vld [vmem:[%s2] sm:$0xf]
    %v263 = vld [vmem:[%s2 + $0x4] sm:$0xf]
    %v264 = vld [vmem:[%s2 + $0x8] sm:$0xf]
    %v265 = vld [vmem:[%s2 + $0xc] sm:$0xf]
    %v266 = vld [vmem:[%s2 + $0x10] sm:$0xf]
    %v267 = vld [vmem:[%s2 + $0x14] sm:$0xf]
    %v268 = vld [vmem:[%s2 + $0x18] sm:$0xf]
    %v269 = vld [vmem:[%s2 + $0x1c] sm:$0xf]
    %v270 = vld [vmem:[%s2 + $0x20] sm:$0xf]
    %v271 = vld [vmem:[%s2 + $0x24] sm:$0xf]
    %v272 = vld [vmem:[%s2 + $0x28] sm:$0xf]
    %v273 = vld [vmem:[%s2 + $0x2c] sm:$0xf]
    %v274 = vld [vmem:[%s2 + $0x30] sm:$0xf]
    %v275 = vld [vmem:[%s2 + $0x34] sm:$0xf]
    %v276 = vld [vmem:[%s2 + $0x38] sm:$0xf]
    %v277 = vld [vmem:[%s2 + $0x3c] sm:$0xf]
    %v278 = vld [vmem:[%s2 + $0x40] sm:$0xf]
    %v279 = vld [vmem:[%s2 + $0x44] sm:$0xf]
    %v280 = vld [vmem:[%s2 + $0x48] sm:$0xf]
    %v281 = vld [vmem:[%s2 + $0x4c] sm:$0xf]
    %v282 = vld [vmem:[%s2 + $0x50] sm:$0xf]
    %v283 = vld [vmem:[%s2 + $0x54] sm:$0xf]
    %v284 = vld [vmem:[%s2 + $0x58] sm:$0xf]
    %v285 = vld [vmem:[%s2 + $0x5c] sm:$0xf]
    %v286 = vld [vmem:[%s2 + $0x60] sm:$0xf]
    %v287 = vld [vmem:[%s2 + $0x64] sm:$0xf]
    %v288 = vld [vmem:[%s2 + $0x68] sm:$0xf]
    %v289 = vld [vmem:[%s2 + $0x6c] sm:$0xf]
    %v290 = vld [vmem:[%s2 + $0x70] sm:$0xf]
    %v291 = vld [vmem:[%s2 + $0x74] sm:$0xf]
    %v292 = vld [vmem:[%s2 + $0x78] sm:$0xf]
    %v293 = vld [vmem:[%s2 + $0x7c] sm:$0xf]
    %v294 = vunpack.c.l.bf16 %v262
    %v295 = vunpack.c.l.bf16 %v263
    %v296 = vunpack.c.l.bf16 %v264
    %v297 = vunpack.c.l.bf16 %v265
    %v298 = vunpack.c.l.bf16 %v266
    %v299 = vunpack.c.l.bf16 %v267
    %v300 = vunpack.c.l.bf16 %v268
    %v301 = vunpack.c.l.bf16 %v269
    %v302 = vunpack.c.l.bf16 %v270
    %v303 = vunpack.c.l.bf16 %v271
    %v304 = vunpack.c.l.bf16 %v272
    %v305 = vunpack.c.l.bf16 %v273
    %v306 = vunpack.c.l.bf16 %v274
    %v307 = vunpack.c.l.bf16 %v275
    %v308 = vunpack.c.l.bf16 %v276
    %v309 = vunpack.c.l.bf16 %v277
    %v310 = vunpack.c.l.bf16 %v278
    %v311 = vunpack.c.l.bf16 %v279
    %v312 = vunpack.c.l.bf16 %v280
    %v313 = vunpack.c.l.bf16 %v281
    %v314 = vunpack.c.l.bf16 %v282
    %v315 = vunpack.c.l.bf16 %v283
    %v316 = vunpack.c.l.bf16 %v284
    %v317 = vunpack.c.l.bf16 %v285
    %v318 = vunpack.c.l.bf16 %v286
    %v319 = vunpack.c.l.bf16 %v287
    %v320 = vunpack.c.l.bf16 %v288
    %v321 = vunpack.c.l.bf16 %v289
    %v322 = vunpack.c.l.bf16 %v290
    %v323 = vunpack.c.l.bf16 %v291
    %v324 = vunpack.c.l.bf16 %v292
    %v325 = vunpack.c.l.bf16 %v293
    %326 = vmatprep.subr.mxu0 0.0
    %327 = vmatpush1.msra.mxu0 %v309
    %328 = vmatprep.subr.mxu0 0.0
    %329 = vmatpush1.msra.mxu0 %v308
    %330 = vmatprep.subr.mxu0 0.0
    %331 = vmatpush1.msra.mxu0 %v307
    %332 = vmatprep.subr.mxu0 0.0
    %333 = vmatpush1.msra.mxu0 %v306
    %334 = vmatprep.subr.mxu0 0.0
    %335 = vmatpush1.msra.mxu0 %v305
    %336 = vmatprep.subr.mxu0 0.0
    %337 = vmatpush1.msra.mxu0 %v304
    %338 = vmatprep.subr.mxu0 0.0
    %339 = vmatpush1.msra.mxu0 %v303
    %340 = vmatprep.subr.mxu0 0.0
    %341 = vmatpush1.msra.mxu0 %v302
    %342 = vmatprep.subr.mxu0 0.0
    %343 = vmatpush1.msra.mxu0 %v301
    %344 = vmatprep.subr.mxu0 0.0
    %345 = vmatpush1.msra.mxu0 %v300
    %346 = vmatprep.subr.mxu0 0.0
    %347 = vmatpush1.msra.mxu0 %v299
    %348 = vmatprep.subr.mxu0 0.0
    %349 = vmatpush1.msra.mxu0 %v298
    %350 = vmatprep.subr.mxu0 0.0
    %351 = vmatpush1.msra.mxu0 %v297
    %352 = vmatprep.subr.mxu0 0.0
    %353 = vmatpush1.msra.mxu0 %v296
    %354 = vmatprep.subr.mxu0 0.0
    %355 = vmatpush1.msra.mxu0 %v295
    %356 = vmatprep.subr.mxu0 0.0
    %357 = vmatpush1.msra.mxu0 %v294
    %358 = vmatprep.subr.mxu0 0.0
    %359 = vmatpush2.msra.mxu0 %v325
    %360 = vmatprep.subr.mxu0 0.0
    %361 = vmatpush2.msra.mxu0 %v324
    %362 = vmatprep.subr.mxu0 0.0
    %363 = vmatpush2.msra.mxu0 %v323
    %364 = vmatprep.subr.mxu0 0.0
    %365 = vmatpush2.msra.mxu0 %v322
    %366 = vmatprep.subr.mxu0 0.0
    %367 = vmatpush2.msra.mxu0 %v321
    %368 = vmatprep.subr.mxu0 0.0
    %369 = vmatpush2.msra.mxu0 %v320
    %370 = vmatprep.subr.mxu0 0.0
    %371 = vmatpush2.msra.mxu0 %v319
    %372 = vmatprep.subr.mxu0 0.0
    %373 = vmatpush2.msra.mxu0 %v318
    %374 = vmatprep.subr.mxu0 0.0
    %375 = vmatpush2.msra.mxu0 %v317
    %376 = vmatprep.subr.mxu0 0.0
    %377 = vmatpush2.msra.mxu0 %v316
    %378 = vmatprep.subr.mxu0 0.0
    %379 = vmatpush2.msra.mxu0 %v315
    %380 = vmatprep.subr.mxu0 0.0
    %381 = vmatpush2.msra.mxu0 %v314
    %382 = vmatprep.subr.mxu0 0.0
    %383 = vmatpush2.msra.mxu0 %v313
    %384 = vmatprep.subr.mxu0 0.0
    %385 = vmatpush2.msra.mxu0 %v312
    %386 = vmatprep.subr.mxu0 0.0
    %387 = vmatpush2.msra.mxu0 %v311
    %388 = vmatprep.subr.mxu0 0.0
    %389 = vmatpush2.msra.mxu0 %v310
    %390 = vmatprep.mubr.f32.mxu0 %v229
    %391 = vmatmul.mubr.f32.gmra.mxu0 %v227
    %v392 = vpop.f32.mrf.mxu0
    %v393 = vadd.f32 0.0, %v392
    %v394 = vpop.f32.mrf.mxu0
    %395 = vdwg.mxu0
    %v396 = vadd.f32 %v261, %v393
    %397 = vst [vmem:[#allocation4] sm:$0xff] %v396
    // Predicated region
    $region22: #{tpu_custom_call.1} parent=1 // pred_check
      %p398 = pneg %p19
    $region23: #{tpu_custom_call.1} parent=1 // pred_check_branch
      %400 = sbr.rel (%p398) target = $region25
    $region24: #{tpu_custom_call.1} parent=1 // pred_region
      %v401 = vld [vmem:[#allocation2] sm:$0xff]
      %v402 = vld [vmem:[#allocation3] sm:$0xff]
      %v403 = vlog2.pop %v402
      %v404 = vmul.f32 %v403, 0.6931472
      %v405 = vadd.f32 %v401, %v404
      %v406 = vld [vmem:[#allocation4] sm:$0xff]
      %v407 = vld [vmem:[%s3] sm:$0x1]
      %409 = vset.pattern.permute.xlu0 0
      %410 = vperm.xlu0 %409, %v405
      %v411 = vpop.permute.xlu0 %410
      %v414 = vlaneseq
      %v415 = vshrl.u32 %v414, 7
      %v416 = vsub.s32 0, %v415
      %v417 = vrot.slane %v407, %v416
      %v419 = vmul.f32 %v411, %v417
      %v420 = vsub.f32 %v406, %v419
      %421 = vst [vmem:[#allocation4] sm:$0xff] %v420
    $region25: #{tpu_custom_call.1} parent=1 // pred_fallthru
      _
    // Predicated region
    $region26: #{tpu_custom_call.1} parent=1 // pred_check
      _
    $region27: #{tpu_custom_call.1} parent=1 // pred_check_branch
      %423 = sbr.rel (0) target = $region29
    $region28: #{tpu_custom_call.1} parent=1 // pred_region
      %s425 = ssub.s32 128, 128
      %426 = vsyncadd [#allocation5], %s425
      %s428 = sshll.u32 [#allocation4], 4
      %s429 = int_to_ptr.vmem [resolvable:$true] %s428
      %431 = dma.vmem_to_hbm [thread:$0]  %s429, 128, %s4, [#allocation5]
    $region29: #{tpu_custom_call.1} parent=1 // pred_fallthru
      _
    // Predicated region
    $region30: #{tpu_custom_call.1} parent=1 // pred_check
      _
    $region31: #{tpu_custom_call.1} parent=1 // pred_check_branch
      %433 = sbr.rel (0) target = $region33
    $region32: #{tpu_custom_call.1} parent=1 // pred_region
      %434 = dma.done [#allocation5], 128
    $region33: #{tpu_custom_call.1} parent=1 // pred_fallthru
      _
    %435 = vsyncpa [#allocation5], 1

</llo_original>
